<compile_context>
chip_gen: v7x
topology: tpu7x:2x2x1
jax: 0.10.0
libtpu: 0.0.40
codegen_flags: <defaults>
</compile_context>

<pallas_src>
import jax
import jax.numpy as jnp
from jax.experimental import pallas as pl
from jax.experimental.pallas import tpu as pltpu

TINY_F32 = 1e-13  # util.tiny_value_of_dtype(torch.float32)


# -----------------------------------------------------------------------------
# Shared hot kernel:  out = sum_k scale[k] * x_k + bias   (elementwise)
# -----------------------------------------------------------------------------
def _make_mix_kernel(K):
    def kernel(scale_ref, bias_ref, *refs):
        # scale_ref: SMEM (K,) f32 ; bias_ref: SMEM (1,) f32
        # refs[:K]:  VMEM (tile_rows, lane) input tiles (one per tensor)
        # refs[K]:   VMEM (tile_rows, lane) output tile
        x_refs = refs[:K]
        o_ref = refs[K]
        acc = scale_ref[0] * x_refs[0][...].astype(jnp.float32) + bias_ref[0]
        for k in range(1, K):  # K is small & static -> unrolled
            acc = acc + scale_ref[k] * x_refs[k][...].astype(jnp.float32)
        o_ref[...] = acc.astype(o_ref.dtype)

    return kernel


def _choose_lane(total_elems, last_dim):
    # Lane-dense 2-D view: pick a last dim that is a multiple of 128 when the
    # total element count allows it; otherwise fall back to the feature dim
    # (block last-dim == full array dim is always legal).
    for lane in (512, 256, 128):
        if total_elems % lane == 0:
            return lane
    return last_dim


def _pick_tile_rows(rows, lane, n_arrays, itemsize,
                    vmem_budget_bytes=12 * 1024 * 1024, max_rows=1024):
    # Double-buffered footprint: 2 copies of every input tile + the output.
    per_row = 2 * n_arrays * lane * itemsize
    tr = min(max_rows, max(8, vmem_budget_bytes // per_row))
    tr = max(8, (tr // 8) * 8)
    # Keep >= 2 grid steps when possible so both v7x TensorCores get work.
    if rows >= 16:
        half = ((rows + 1) // 2 + 7) // 8 * 8  # round_up8(ceil(rows/2))
        tr = min(tr, half)
    if tr >= rows:
        return rows  # single full block (block dim == array dim is legal)
    return tr


def _mix_pallas(tensors, scale, bias):
    """out = sum_k scale[k] * tensors[k] + bias, elementwise, via Pallas."""
    K = len(tensors)
    shape = tensors[0].shape
    dtype = tensors[0].dtype
    total = 1
    for s in shape:
        total *= int(s)

    lane = _choose_lane(total, int(shape[-1]))
    rows = total // lane
    xs = [t.reshape(rows, lane) for t in tensors]  # metadata-only reshape

    itemsize = jnp.dtype(dtype).itemsize
    tile_rows = _pick_tile_rows(rows, lane, K + 1, itemsize)
    grid = (pl.cdiv(rows, tile_rows),)  # tail block is masked automatically

    tile_spec = pl.BlockSpec((tile_rows, lane), lambda i: (i, 0))
    out = pl.pallas_call(
        _make_mix_kernel(K),
        out_shape=jax.ShapeDtypeStruct((rows, lane), dtype),
        grid=grid,
        in_specs=[pl.BlockSpec(memory_space=pltpu.SMEM),   # scale (K,)
                  pl.BlockSpec(memory_space=pltpu.SMEM)]   # bias  (1,)
                 + [tile_spec] * K,
        out_specs=tile_spec,
        compiler_params=pltpu.CompilerParams(
            dimension_semantics=("parallel",),
            vmem_limit_bytes=32 * 1024 * 1024),
    )(scale, bias, *xs)
    return out.reshape(shape)


# -----------------------------------------------------------------------------
# Public wrappers
# -----------------------------------------------------------------------------
def scalar_mix(tensors, scalar_parameters, gamma):
    """do_layer_norm=False path: gamma * sum_k softmax(w)[k] * tensors[k]."""
    w = jax.nn.softmax(scalar_parameters.astype(jnp.float32).reshape(-1))
    g = gamma.astype(jnp.float32).reshape(-1)[0]
    scale = (g * w).astype(jnp.float32)          # gamma folded into weights
    bias = jnp.zeros((1,), jnp.float32)
    return _mix_pallas(tensors, scale, bias)


def scalar_mix_layer_norm(tensors, scalar_parameters, gamma, mask):
    """do_layer_norm=True path (global masked layer norm per tensor)."""
    K = len(tensors)
    D = tensors[0].shape[-1]
    w = jax.nn.softmax(scalar_parameters.astype(jnp.float32).reshape(-1))
    g = gamma.astype(jnp.float32).reshape(-1)[0]

    mask_f = mask.astype(jnp.float32)
    bmask = mask_f[..., None]                            # (..., 1)
    n = jnp.sum(mask_f) * jnp.float32(D)                 # #not-masked elements

    # Stats pre-pass: K pairs of global scalars (masked mean / variance),
    # computed in one fused read per tensor (sum & sum-of-squares).
    # var = E[x^2] - mean^2 is algebraically identical to the reference's
    # masked two-pass formula (mask is 0/1 so the masked terms cancel).
    # TODO(synk): fold this reduction into a tiled Pallas pre-pass kernel to
    # share DMA with the mix pass for very large tensors.
    means, varis = [], []
    for k in range(K):
        tm = tensors[k].astype(jnp.float32) * bmask
        s1 = jnp.sum(tm)
        s2 = jnp.sum(tm * tm)
        mean = s1 / n
        means.append(mean)
        varis.append(jnp.maximum(s2 / n - mean * mean, 0.0))
    means = jnp.stack(means)                             # (K,)
    varis = jnp.stack(varis)                             # (K,)

    inv_std = jax.lax.rsqrt(varis + jnp.float32(TINY_F32))
    scale = (g * w * inv_std).astype(jnp.float32)        # (K,)
    bias = jnp.reshape(-jnp.sum(scale * means), (1,)).astype(jnp.float32)
    return _mix_pallas(tensors, scale, bias)


# -----------------------------------------------------------------------------
# Pure-JAX references (for correctness check)
# -----------------------------------------------------------------------------
def _ref_scalar_mix(tensors, sp, gamma):
    w = jax.nn.softmax(sp)
    return gamma[0] * sum(w[k] * tensors[k] for k in range(len(tensors)))


def _ref_scalar_mix_ln(tensors, sp, gamma, mask):
    w = jax.nn.softmax(sp)
    bmask = mask.astype(jnp.float32)[..., None]
    D = tensors[0].shape[-1]
    n = jnp.sum(mask.astype(jnp.float32)) * D
    out = 0.0
    for k in range(len(tensors)):
        t = tensors[k]
        tm = t * bmask
        mean = jnp.sum(tm) / n
        var = jnp.sum(((tm - mean) * bmask) ** 2) / n
        out = out + w[k] * (t - mean) / jnp.sqrt(var + TINY_F32)
    return gamma[0] * out


if __name__ == "__main__":
    key = jax.random.PRNGKey(0)
    K = 3
    scalar_parameters = jnp.array([0.0, 0.5, -0.25], dtype=jnp.float32)
    gamma = jnp.array([1.0], dtype=jnp.float32)

    # (2, 8, 32): lane-dense 512-wide view; (2, 9, 160): exercises multi-tile
    # grid with a masked tail block (rows % tile_rows != 0).
    for (B, T, D) in [(2, 8, 32), (2, 9, 160)]:
        keys = jax.random.split(jax.random.fold_in(key, B * 1000 + T * 10 + D),
                                K + 1)
        tensors = [jax.random.normal(keys[i], (B, T, D), dtype=jnp.float32)
                   for i in range(K)]
        mask = jax.random.uniform(keys[K], (B, T)) > 0.2

        # --- do_layer_norm=False path ---
        out = jax.block_until_ready(scalar_mix(tensors, scalar_parameters, gamma))
        ref = _ref_scalar_mix(tensors, scalar_parameters, gamma)
        assert jnp.allclose(out, ref, atol=1e-5, rtol=1e-5), \
            f"no-LN mismatch at {(B, T, D)}"

        # --- do_layer_norm=True path ---
        out_ln = jax.block_until_ready(
            scalar_mix_layer_norm(tensors, scalar_parameters, gamma, mask))
        ref_ln = _ref_scalar_mix_ln(tensors, scalar_parameters, gamma, mask)
        assert jnp.allclose(out_ln, ref_ln, atol=1e-4, rtol=1e-4), \
            f"LN mismatch at {(B, T, D)}"

    print("KERNEL_OK")
</pallas_src>

<mosaic_0001>
module attributes {stable_mosaic.version = 11 : i64} {
  func.func @kernel(%arg0: i32, %arg1: memref<3xf32, #tpu.memory_space<smem>>, %arg2: memref<1xf32, #tpu.memory_space<smem>>, %arg3: memref<1x512xf32, #tpu.memory_space<vmem>>, %arg4: memref<1x512xf32, #tpu.memory_space<vmem>>, %arg5: memref<1x512xf32, #tpu.memory_space<vmem>>, %arg6: memref<1x512xf32, #tpu.memory_space<vmem>>) attributes {dimension_semantics = [#tpu.dimension_semantics<parallel>], iteration_bounds = array<i64: 1>, scalar_prefetch = 0 : i64, scratch_operands = 0 : i64, tpu.core_type = #tpu.core_type<tc>, window_params = [{transform_indices = @transform_0, window_bounds = array<i64: 3>}, {transform_indices = @transform_1, window_bounds = array<i64: 1>}, {transform_indices = @transform_2, window_bounds = array<i64: 1, 512>}, {transform_indices = @transform_3, window_bounds = array<i64: 1, 512>}, {transform_indices = @transform_4, window_bounds = array<i64: 1, 512>}, {transform_indices = @transform_5, window_bounds = array<i64: 1, 512>}]} {
    %c0 = arith.constant 0 : index
    %0 = memref.load %arg1[%c0] : memref<3xf32, #tpu.memory_space<smem>>
    %c0_0 = arith.constant 0 : index
    %c0_1 = arith.constant 0 : index
    %1 = vector.load %arg3[%c0_0, %c0_1] : memref<1x512xf32, #tpu.memory_space<vmem>>, vector<1x512xf32>
    %2 = vector.broadcast %0 : f32 to vector<1x512xf32>
    %3 = arith.mulf %2, %1 : vector<1x512xf32>
    %c0_2 = arith.constant 0 : index
    %4 = memref.load %arg2[%c0_2] : memref<1xf32, #tpu.memory_space<smem>>
    %5 = vector.broadcast %4 : f32 to vector<1x512xf32>
    %6 = arith.addf %3, %5 : vector<1x512xf32>
    %c1 = arith.constant 1 : index
    %7 = memref.load %arg1[%c1] : memref<3xf32, #tpu.memory_space<smem>>
    %c0_3 = arith.constant 0 : index
    %c0_4 = arith.constant 0 : index
    %8 = vector.load %arg4[%c0_3, %c0_4] : memref<1x512xf32, #tpu.memory_space<vmem>>, vector<1x512xf32>
    %9 = vector.broadcast %7 : f32 to vector<1x512xf32>
    %10 = arith.mulf %9, %8 : vector<1x512xf32>
    %11 = arith.addf %6, %10 : vector<1x512xf32>
    %c2 = arith.constant 2 : index
    %12 = memref.load %arg1[%c2] : memref<3xf32, #tpu.memory_space<smem>>
    %c0_5 = arith.constant 0 : index
    %c0_6 = arith.constant 0 : index
    %13 = vector.load %arg5[%c0_5, %c0_6] : memref<1x512xf32, #tpu.memory_space<vmem>>, vector<1x512xf32>
    %14 = vector.broadcast %12 : f32 to vector<1x512xf32>
    %15 = arith.mulf %14, %13 : vector<1x512xf32>
    %16 = arith.addf %11, %15 : vector<1x512xf32>
    %c0_7 = arith.constant 0 : index
    %c0_8 = arith.constant 0 : index
    %17 = vector.load %arg6[%c0_7, %c0_8] : memref<1x512xf32, #tpu.memory_space<vmem>>, vector<1x512xf32>
    tpu.vector_store %arg6[%c0_7, %c0_8], %16 {strides = array<i32>} : memref<1x512xf32, #tpu.memory_space<vmem>>, vector<1x512xf32>,
    return
  }
  func.func @transform_0(%arg0: i32) -> i32 {
    %c0_i32 = arith.constant 0 : i32
    %c0_i32_0 = arith.constant 0 : i32
    return %c0_i32 : i32
  }
  func.func @transform_1(%arg0: i32) -> i32 {
    %c0_i32 = arith.constant 0 : i32
    %c0_i32_0 = arith.constant 0 : i32
    return %c0_i32 : i32
  }
  func.func @transform_2(%arg0: i32) -> (i32, i32) {
    %c0_i32 = arith.constant 0 : i32
    %c0_i32_0 = arith.constant 0 : i32
    return %arg0, %c0_i32 : i32, i32
  }
  func.func @transform_3(%arg0: i32) -> (i32, i32) {
    %c0_i32 = arith.constant 0 : i32
    %c0_i32_0 = arith.constant 0 : i32
    return %arg0, %c0_i32 : i32, i32
  }
  func.func @transform_4(%arg0: i32) -> (i32, i32) {
    %c0_i32 = arith.constant 0 : i32
    %c0_i32_0 = arith.constant 0 : i32
    return %arg0, %c0_i32 : i32, i32
  }
  func.func @transform_5(%arg0: i32) -> (i32, i32) {
    %c0_i32 = arith.constant 0 : i32
    %c0_i32_0 = arith.constant 0 : i32
    return %arg0, %c0_i32 : i32, i32
  }
}

</mosaic_0001>

<llo_original>
// kernel: tpu_custom_call.1
$region0: #{tpu_custom_call.1}
  #allocation0 [shape = 'u32[]', space=smem, size = 0x4, offset = 0x4, fixed_abs, tag = 'smem constant byte address 0x4 - core index']
  #allocation1 [shape = 'u32[144,128]{1,0:T(1,128)}', space=vmem, size = 0x12000, scoped, tag = 'internal scratch']
  #allocation2 [shape = 'f32[1]{0:T(128)S(6)}', space=smem, size = 0x200, scoped, tag = 'scoped memory for tpu_custom_call.1']
  %s0 = inlined_call_operand.vmem [shape: f32[3], index: 0, kind: input, shape index: {}]
  %s1 = inlined_call_operand.<no memory space> [shape: f32[1], index: 1, kind: input, shape index: {}]
  %s2 = inlined_call_operand.vmem [shape: f32[1,512], index: 2, kind: input, shape index: {}]
  %s3 = inlined_call_operand.vmem [shape: f32[1,512], index: 3, kind: input, shape index: {}]
  %s4 = inlined_call_operand.vmem [shape: f32[1,512], index: 4, kind: input, shape index: {}]
  %s5 = inlined_call_operand.hbm [shape: f32[1,512], index: 5, kind: output, shape index: {}]
  %s6 = sld [smem:[#allocation0]]
  $region34: #{tpu_custom_call.1} parent=0
    _
  %s8 = ssub.s32 1, %s6
  %s9 = scalar_select 0, %s8, %s6
  %10 = sst [smem:[#allocation2]] %s1
  $region1: #{tpu_custom_call.1} parent=0
    #allocation3 [shape = 'u8[512]{0}', space=smem, size = 0x200, scoped, tag = 'input window, operand 0, single buffered']
    #allocation4 [shape = 's32[1]{0}', space=sflag, size = 0x4, scoped, tag = 'scoped memory for tpu_custom_call.1']
    #allocation5 [shape = 's32[1]{0}', space=sflag, size = 0x4, scoped, tag = 'scoped memory for tpu_custom_call.1']
    #allocation6 [shape = 'u8[2048]{0}', space=vmem, size = 0x800, scoped, tag = 'output window, operand 0, single buffered']
    %11 = vsyncpa [#allocation5], 0
    %12 = vsyncpa [#allocation4], 0
    // Predicated region
    $region2: #{tpu_custom_call.1} parent=1 // pred_check
      _
    $region3: #{tpu_custom_call.1} parent=1 // pred_check_branch
      %14 = sbr.rel (0) target = $region5
    $region4: #{tpu_custom_call.1} parent=1 // pred_region
      %s16 = ssub.s32 16, 16
      %17 = vsyncadd [#allocation5], %s16
      %s19 = sshll.u32 %s0, 4
      %s20 = int_to_ptr.vmem [resolvable:$true] %s19
      %22 = dma.vmem_to_smem %s20, 16, [#allocation3], [#allocation5]
    $region5: #{tpu_custom_call.1} parent=1 // pred_fallthru
      _
    // Predicated region
    $region6: #{tpu_custom_call.1} parent=1 // pred_check
      _
    $region7: #{tpu_custom_call.1} parent=1 // pred_check_branch
      %24 = sbr.rel (0) target = $region9
    $region8: #{tpu_custom_call.1} parent=1 // pred_region
      _
    $region9: #{tpu_custom_call.1} parent=1 // pred_fallthru
      _
    // Predicated region
    $region10: #{tpu_custom_call.1} parent=1 // pred_check
      _
    $region11: #{tpu_custom_call.1} parent=1 // pred_check_branch
      %26 = sbr.rel (0) target = $region13
    $region12: #{tpu_custom_call.1} parent=1 // pred_region
      _
    $region13: #{tpu_custom_call.1} parent=1 // pred_fallthru
      _
    // Predicated region
    $region14: #{tpu_custom_call.1} parent=1 // pred_check
      _
    $region15: #{tpu_custom_call.1} parent=1 // pred_check_branch
      %28 = sbr.rel (0) target = $region17
    $region16: #{tpu_custom_call.1} parent=1 // pred_region
      _
    $region17: #{tpu_custom_call.1} parent=1 // pred_fallthru
      _
    // Predicated region
    $region18: #{tpu_custom_call.1} parent=1 // pred_check
      _
    $region19: #{tpu_custom_call.1} parent=1 // pred_check_branch
      %30 = sbr.rel (0) target = $region21
    $region20: #{tpu_custom_call.1} parent=1 // pred_region
      _
    $region21: #{tpu_custom_call.1} parent=1 // pred_fallthru
      _
    // Predicated region
    $region22: #{tpu_custom_call.1} parent=1 // pred_check
      _
    $region23: #{tpu_custom_call.1} parent=1 // pred_check_branch
      %32 = sbr.rel (0) target = $region25
    $region24: #{tpu_custom_call.1} parent=1 // pred_region
      %33 = dma.done [#allocation5], 16
    $region25: #{tpu_custom_call.1} parent=1 // pred_fallthru
      _
    %34 = sfence
    %s35 = sld [smem:[#allocation3]]
    %v36 = vld [vmem:[%s2] sm:$0xf]
    %v37 = vstv %s35
    %v38 = vmul.f32 %v37, %v36
    %s39 = sld [smem:[#allocation2]]
    %v40 = vstv %s39
    %v41 = vadd.f32 %v38, %v40
    %s42 = sld [smem:[#allocation3 + $0x1]]
    %v43 = vld [vmem:[%s3] sm:$0xf]
    %v44 = vstv %s42
    %v45 = vmul.f32 %v44, %v43
    %v46 = vadd.f32 %v41, %v45
    %s47 = sld [smem:[#allocation3 + $0x2]]
    %v48 = vld [vmem:[%s4] sm:$0xf]
    %v49 = vstv %s47
    %v50 = vmul.f32 %v49, %v48
    %v51 = vadd.f32 %v46, %v50
    %v52 = vlaneseq
    %vm53 = vcmp.ge.s32.totalorder %v52, 0
    %vm54 = vcmp.lt.s32.totalorder %v52, 512
    %vm55 = vmand %vm53, %vm54
    %56 = vst.msk [vmem:[#allocation6] sm:$0xf] %vm55, %v51
    // Predicated region
    $region26: #{tpu_custom_call.1} parent=1 // pred_check
      _
    $region27: #{tpu_custom_call.1} parent=1 // pred_check_branch
      %58 = sbr.rel (0) target = $region29
    $region28: #{tpu_custom_call.1} parent=1 // pred_region
      %s60 = ssub.s32 64, 64
      %61 = vsyncadd [#allocation4], %s60
      %s63 = sshll.u32 [#allocation6], 4
      %s64 = int_to_ptr.vmem [resolvable:$true] %s63
      %66 = dma.vmem_to_hbm [thread:$0]  %s64, 64, %s5, [#allocation4]
    $region29: #{tpu_custom_call.1} parent=1 // pred_fallthru
      _
    // Predicated region
    $region30: #{tpu_custom_call.1} parent=1 // pred_check
      _
    $region31: #{tpu_custom_call.1} parent=1 // pred_check_branch
      %68 = sbr.rel (0) target = $region33
    $region32: #{tpu_custom_call.1} parent=1 // pred_region
      %69 = dma.done [#allocation4], 64
    $region33: #{tpu_custom_call.1} parent=1 // pred_fallthru
      _
    %70 = vsyncpa [#allocation4], 1
    %71 = vsyncpa [#allocation5], 1

</llo_original>
